<compile_context>
chip_gen: v5e
topology: v5e:2x2
jax: 0.10.0
libtpu: 0.0.40
codegen_flags: <defaults>
</compile_context>

<pallas_src>
import functools

import jax
import jax.numpy as jnp
from jax.experimental import pallas as pl
from jax.experimental.pallas import tpu as pltpu


def gated_coattention_kernel(d_dim, p_dim,
                             drug_ref, prot_ref,
                             w_d_ref, b_d_ref,    # fused drug-input proj
                             w_p_ref, b_p_ref,    # fused protein-input proj
                             w_a_ref, b_a_ref,    # fused Door proj of `a`
                             w_b_ref, b_b_ref,    # fused Door proj of `b`
                             a_out_ref, b_out_ref):
    bb, ld, _ = drug_ref.shape
    _, lp, _ = prot_ref.shape
    mxu = w_d_ref.dtype                      # MXU operand dtype (bf16 or f32)

    drug = drug_ref[...].astype(jnp.float32)     # (bb, ld, d)
    prot = prot_ref[...].astype(jnp.float32)     # (bb, lp, p)

    # ---- Fused batch-independent projections (flatten batch into rows) ----
    drug2 = drug.reshape(bb * ld, d_dim).astype(mxu)
    prot2 = prot.reshape(bb * lp, p_dim).astype(mxu)

    # drug projections: [ Wb(drug) | Wp(drug) | dw1(drug) | dw3(drug) ]
    proj_d = jnp.dot(drug2, w_d_ref[...],
                     preferred_element_type=jnp.float32) + b_d_ref[...]
    wb_drug = proj_d[:, :p_dim]                                # (bb*ld, p)
    wp_drug = proj_d[:, p_dim:2 * p_dim]                       # (bb*ld, p)
    d_lin1 = proj_d[:, 2 * p_dim:2 * p_dim + d_dim]            # dw1(drug)
    d_lin3 = proj_d[:, 2 * p_dim + d_dim:]                     # dw3(drug)

    # protein projections: [ Wd(prot) | pw1(prot) | pw3(prot) ]
    proj_p = jnp.dot(prot2, w_p_ref[...],
                     preferred_element_type=jnp.float32) + b_p_ref[...]
    wd_prot = proj_p[:, :d_dim]                                # (bb*lp, d)
    p_lin1 = proj_p[:, d_dim:d_dim + p_dim]                    # pw1(prot)
    p_lin3 = proj_p[:, d_dim + p_dim:]                         # pw3(prot)

    # ---- Co-attention (batched, no explicit transposes) ----
    wb_drug3 = wb_drug.reshape(bb, ld, p_dim).astype(mxu)
    prot3 = prot.astype(mxu)
    # C[b,i,j] = sum_p Wb(drug)[b,i,p] * protein[b,j,p]
    C = jnp.einsum("bip,bjp->bij", wb_drug3, prot3,
                   preferred_element_type=jnp.float32)          # (bb, ld, lp)

    drug2protein = jax.nn.sigmoid(C * (p_dim ** -0.5))          # (bb, ld, lp)
    # sigmoid(C^T * d_scale) is used implicitly via the contraction below.
    protein2drug_t = jax.nn.sigmoid(C * (d_dim ** -0.5))        # (bb, ld, lp)

    wd_prot3 = wd_prot.reshape(bb, lp, d_dim).astype(mxu)
    a = jnp.einsum("bij,bjd->bid", drug2protein.astype(mxu), wd_prot3,
                   preferred_element_type=jnp.float32)          # (bb, ld, d)

    wp_drug3 = wp_drug.reshape(bb, ld, p_dim).astype(mxu)
    # b[b,j,p] = sum_i sigmoid(C[b,i,j]*d_scale) * Wp(drug)[b,i,p]
    b_att = jnp.einsum("bij,bip->bjp", protein2drug_t.astype(mxu), wp_drug3,
                       preferred_element_type=jnp.float32)      # (bb, lp, p)

    # ---- Drug Door: f = sig(dw1(drug)+dw2(a)); f*tanh(dw3(drug))+(1-f)*tanh(dw4(a))
    a2 = a.reshape(bb * ld, d_dim)
    proj_a = jnp.dot(a2.astype(mxu), w_a_ref[...],
                     preferred_element_type=jnp.float32) + b_a_ref[...]
    f_d = jax.nn.sigmoid(d_lin1 + proj_a[:, :d_dim])
    out_a = f_d * jnp.tanh(d_lin3) + (1.0 - f_d) * jnp.tanh(proj_a[:, d_dim:])

    # ---- Protein Door: f = sig(pw1(prot)+pw2(b)); f*tanh(pw3(prot))+(1-f)*tanh(pw4(b))
    b2 = b_att.reshape(bb * lp, p_dim)
    proj_b = jnp.dot(b2.astype(mxu), w_b_ref[...],
                     preferred_element_type=jnp.float32) + b_b_ref[...]
    f_p = jax.nn.sigmoid(p_lin1 + proj_b[:, :p_dim])
    out_b = f_p * jnp.tanh(p_lin3) + (1.0 - f_p) * jnp.tanh(proj_b[:, p_dim:])

    a_out_ref[...] = out_a.reshape(bb, ld, d_dim).astype(a_out_ref.dtype)
    b_out_ref[...] = out_b.reshape(bb, lp, p_dim).astype(b_out_ref.dtype)


def _pick_block_b(B, max_block=8):
    """Largest divisor of B (<= max_block) that still leaves >= 2 grid steps
    when possible (keeps both v7x TensorCores busy)."""
    divisors = [d for d in range(1, min(B, max_block) + 1) if B % d == 0]
    pref = [d for d in divisors if B // d >= 2]
    return max(pref) if pref else max(divisors)


def gated_coattention(drug, protein, params, d_dim, p_dim, *,
                      block_b=None, mxu_dtype=jnp.bfloat16):
    B, Ld, _ = drug.shape
    _, Lp, _ = protein.shape
    if block_b is None:
        block_b = _pick_block_b(B)
    assert B % block_b == 0
    grid_b = B // block_b
    f32 = jnp.float32

    # Fuse weights along the output dimension (one wide matmul per input).
    w_d = jnp.concatenate([params["wb_w"], params["wp_w"],
                           params["dw1"], params["dw3"]], axis=1).astype(mxu_dtype)
    b_d = jnp.concatenate([params["wb_b"], params["wp_b"],
                           params["db1"], params["db3"]], axis=1).astype(f32)
    w_p = jnp.concatenate([params["wd_w"], params["pw1"],
                           params["pw3"]], axis=1).astype(mxu_dtype)
    b_p = jnp.concatenate([params["wd_b"], params["pb1"],
                           params["pb3"]], axis=1).astype(f32)
    w_a = jnp.concatenate([params["dw2"], params["dw4"]], axis=1).astype(mxu_dtype)
    b_a = jnp.concatenate([params["db2"], params["db4"]], axis=1).astype(f32)
    w_b = jnp.concatenate([params["pw2"], params["pw4"]], axis=1).astype(mxu_dtype)
    b_b = jnp.concatenate([params["pb2"], params["pb4"]], axis=1).astype(f32)
    weights = [w_d, b_d, w_p, b_p, w_a, b_a, w_b, b_b]

    def seq_spec(L, D):
        return pl.BlockSpec((block_b, L, D), lambda g: (g, 0, 0))

    def full_spec(arr):
        # Constant index map -> weights stay resident in VMEM across steps.
        return pl.BlockSpec(arr.shape, lambda g: (0, 0))

    kernel = functools.partial(gated_coattention_kernel, d_dim, p_dim)

    return pl.pallas_call(
        kernel,
        grid=(grid_b,),
        in_specs=[seq_spec(Ld, d_dim), seq_spec(Lp, p_dim)]
                 + [full_spec(w) for w in weights],
        out_specs=(seq_spec(Ld, d_dim), seq_spec(Lp, p_dim)),
        out_shape=(jax.ShapeDtypeStruct((B, Ld, d_dim), drug.dtype),
                   jax.ShapeDtypeStruct((B, Lp, p_dim), protein.dtype)),
        compiler_params=pltpu.CompilerParams(
            dimension_semantics=("parallel",),
            vmem_limit_bytes=32 * 1024 * 1024),
    )(drug, protein, *weights)


# ---------------------------------------------------------------------------
# Pure-JAX reference matching the PyTorch module semantics.
# ---------------------------------------------------------------------------
PARAM_ORDER = ["wb_w", "wb_b", "wd_w", "wd_b", "wp_w", "wp_b",
               "dw1", "db1", "dw2", "db2", "dw3", "db3", "dw4", "db4",
               "pw1", "pb1", "pw2", "pb2", "pw3", "pb3", "pw4", "pb4"]


def ref_forward(drug, protein, params, d_dim, p_dim):
    lin = lambda x, w, b: x @ w + b

    def door(x1, x2, w1, b1, w2, b2, w3, b3, w4, b4):
        f = jax.nn.sigmoid(lin(x1, w1, b1) + lin(x2, w2, b2))
        return f * jnp.tanh(lin(x1, w3, b3)) + (1 - f) * jnp.tanh(lin(x2, w4, b4))

    C = jnp.einsum("bip,bjp->bij", lin(drug, params["wb_w"], params["wb_b"]), protein)
    d2p = jax.nn.sigmoid(C * (p_dim ** -0.5))
    p2d = jax.nn.sigmoid(jnp.swapaxes(C, 1, 2) * (d_dim ** -0.5))
    a = jnp.einsum("bij,bjd->bid", d2p, lin(protein, params["wd_w"], params["wd_b"]))
    b = jnp.einsum("bli,bip->blp", p2d, lin(drug, params["wp_w"], params["wp_b"]))
    a = door(drug, a, params["dw1"], params["db1"], params["dw2"], params["db2"],
             params["dw3"], params["db3"], params["dw4"], params["db4"])
    b = door(protein, b, params["pw1"], params["pb1"], params["pw2"], params["pb2"],
             params["pw3"], params["pb3"], params["pw4"], params["pb4"])
    return a, b


def make_params(key, d_dim, p_dim):
    shapes = {
        "wb_w": (d_dim, p_dim), "wb_b": (1, p_dim),
        "wd_w": (p_dim, d_dim), "wd_b": (1, d_dim),
        "wp_w": (d_dim, p_dim), "wp_b": (1, p_dim),
        "dw1": (d_dim, d_dim), "db1": (1, d_dim),
        "dw2": (d_dim, d_dim), "db2": (1, d_dim),
        "dw3": (d_dim, d_dim), "db3": (1, d_dim),
        "dw4": (d_dim, d_dim), "db4": (1, d_dim),
        "pw1": (p_dim, p_dim), "pb1": (1, p_dim),
        "pw2": (p_dim, p_dim), "pb2": (1, p_dim),
        "pw3": (p_dim, p_dim), "pb3": (1, p_dim),
        "pw4": (p_dim, p_dim), "pb4": (1, p_dim),
    }
    keys = jax.random.split(key, len(PARAM_ORDER))
    params = {}
    for k, name in zip(keys, PARAM_ORDER):
        params[name] = 0.1 * jax.random.normal(k, shapes[name], dtype=jnp.float32)
    return params


if __name__ == "__main__":
    B, Ld, Lp = 2, 8, 16
    d_dim, p_dim = 32, 64

    root = jax.random.PRNGKey(0)
    k_drug, k_prot, k_params = jax.random.split(root, 3)
    drug = jax.random.normal(k_drug, (B, Ld, d_dim), dtype=jnp.float32)
    protein = jax.random.normal(k_prot, (B, Lp, p_dim), dtype=jnp.float32)
    params = make_params(k_params, d_dim, p_dim)

    a_ref, b_ref = ref_forward(drug, protein, params, d_dim, p_dim)

    # Exact-path check (f32 MXU operands): should match the reference tightly.
    a_f32, b_f32 = gated_coattention(drug, protein, params, d_dim, p_dim,
                                     mxu_dtype=jnp.float32)
    jax.block_until_ready((a_f32, b_f32))
    assert a_f32.shape == (B, Ld, d_dim) and b_f32.shape == (B, Lp, p_dim)
    assert jnp.allclose(a_f32, a_ref, atol=2e-3, rtol=2e-3)
    assert jnp.allclose(b_f32, b_ref, atol=2e-3, rtol=2e-3)

    # Performance path (bf16 MXU operands, f32 accumulation & gating math).
    a_out, b_out = gated_coattention(drug, protein, params, d_dim, p_dim,
                                     mxu_dtype=jnp.bfloat16)
    jax.block_until_ready((a_out, b_out))
    assert jnp.allclose(a_out, a_ref, atol=2e-2, rtol=2e-2)
    assert jnp.allclose(b_out, b_ref, atol=2e-2, rtol=2e-2)

    print("KERNEL_OK")
</pallas_src>

<mosaic_0001>
module attributes {stable_mosaic.version = 11 : i64} {
  func.func @gated_coattention_kernel(%arg0: i32, %arg1: memref<1x8x32xf32, #tpu.memory_space<vmem>>, %arg2: memref<1x16x64xf32, #tpu.memory_space<vmem>>, %arg3: memref<32x192xf32, #tpu.memory_space<vmem>>, %arg4: memref<1x192xf32, #tpu.memory_space<vmem>>, %arg5: memref<64x160xf32, #tpu.memory_space<vmem>>, %arg6: memref<1x160xf32, #tpu.memory_space<vmem>>, %arg7: memref<32x64xf32, #tpu.memory_space<vmem>>, %arg8: memref<1x64xf32, #tpu.memory_space<vmem>>, %arg9: memref<64x128xf32, #tpu.memory_space<vmem>>, %arg10: memref<1x128xf32, #tpu.memory_space<vmem>>, %arg11: memref<1x8x32xf32, #tpu.memory_space<vmem>>, %arg12: memref<1x16x64xf32, #tpu.memory_space<vmem>>) attributes {dimension_semantics = [#tpu.dimension_semantics<parallel>], iteration_bounds = array<i64: 2>, scalar_prefetch = 0 : i64, scratch_operands = 0 : i64, tpu.core_type = #tpu.core_type<tc>, window_params = [{transform_indices = @transform_0, window_bounds = array<i64: 1, 8, 32>}, {transform_indices = @transform_1, window_bounds = array<i64: 1, 16, 64>}, {pipeline_mode = #tpu.pipeline_mode<synchronous>, transform_indices = @transform_2, window_bounds = array<i64: 32, 192>}, {pipeline_mode = #tpu.pipeline_mode<synchronous>, transform_indices = @transform_3, window_bounds = array<i64: 1, 192>}, {pipeline_mode = #tpu.pipeline_mode<synchronous>, transform_indices = @transform_4, window_bounds = array<i64: 64, 160>}, {pipeline_mode = #tpu.pipeline_mode<synchronous>, transform_indices = @transform_5, window_bounds = array<i64: 1, 160>}, {pipeline_mode = #tpu.pipeline_mode<synchronous>, transform_indices = @transform_6, window_bounds = array<i64: 32, 64>}, {pipeline_mode = #tpu.pipeline_mode<synchronous>, transform_indices = @transform_7, window_bounds = array<i64: 1, 64>}, {pipeline_mode = #tpu.pipeline_mode<synchronous>, transform_indices = @transform_8, window_bounds = array<i64: 64, 128>}, {pipeline_mode = #tpu.pipeline_mode<synchronous>, transform_indices = @transform_9, window_bounds = array<i64: 1, 128>}, {transform_indices = @transform_10, window_bounds = array<i64: 1, 8, 32>}, {transform_indices = @transform_11, window_bounds = array<i64: 1, 16, 64>}]} {
    %c0 = arith.constant 0 : index
    %c0_0 = arith.constant 0 : index
    %c0_1 = arith.constant 0 : index
    %0 = vector.load %arg1[%c0, %c0_0, %c0_1] : memref<1x8x32xf32, #tpu.memory_space<vmem>>, vector<1x8x32xf32>
    %c0_2 = arith.constant 0 : index
    %c0_3 = arith.constant 0 : index
    %c0_4 = arith.constant 0 : index
    %1 = vector.load %arg2[%c0_2, %c0_3, %c0_4] : memref<1x16x64xf32, #tpu.memory_space<vmem>>, vector<1x16x64xf32>
    %2 = vector.shape_cast %0 : vector<1x8x32xf32> to vector<8x32xf32>
    %3 = vector.shape_cast %1 : vector<1x16x64xf32> to vector<16x64xf32>
    %c0_5 = arith.constant 0 : index
    %c0_6 = arith.constant 0 : index
    %4 = vector.load %arg3[%c0_5, %c0_6] : memref<32x192xf32, #tpu.memory_space<vmem>>, vector<32x192xf32>
    %cst = arith.constant dense<0.000000e+00> : vector<8x192xf32>
    %5 = tpu.matmul %2, %4, %cst {dimension_numbers = #tpu.dot_dimension_numbers<[1], [0], [0], [1], [0, 0, 1, 1], [], []>} : vector<8x32xf32>, vector<32x192xf32>, vector<8x192xf32> -> vector<8x192xf32>
    %c0_7 = arith.constant 0 : index
    %c0_8 = arith.constant 0 : index
    %6 = vector.load %arg4[%c0_7, %c0_8] : memref<1x192xf32, #tpu.memory_space<vmem>>, vector<1x192xf32>
    %7 = vector.broadcast %6 : vector<1x192xf32> to vector<8x192xf32>
    %8 = arith.addf %5, %7 : vector<8x192xf32>
    %9 = vector.extract_strided_slice %8 {offsets = [0, 0], sizes = [8, 64], strides = [1, 1]} : vector<8x192xf32> to vector<8x64xf32>
    %10 = vector.extract_strided_slice %8 {offsets = [0, 64], sizes = [8, 64], strides = [1, 1]} : vector<8x192xf32> to vector<8x64xf32>
    %11 = vector.extract_strided_slice %8 {offsets = [0, 128], sizes = [8, 32], strides = [1, 1]} : vector<8x192xf32> to vector<8x32xf32>
    %12 = vector.extract_strided_slice %8 {offsets = [0, 160], sizes = [8, 32], strides = [1, 1]} : vector<8x192xf32> to vector<8x32xf32>
    %c0_9 = arith.constant 0 : index
    %c0_10 = arith.constant 0 : index
    %13 = vector.load %arg5[%c0_9, %c0_10] : memref<64x160xf32, #tpu.memory_space<vmem>>, vector<64x160xf32>
    %cst_11 = arith.constant dense<0.000000e+00> : vector<16x160xf32>
    %14 = tpu.matmul %3, %13, %cst_11 {dimension_numbers = #tpu.dot_dimension_numbers<[1], [0], [0], [1], [0, 0, 1, 1], [], []>} : vector<16x64xf32>, vector<64x160xf32>, vector<16x160xf32> -> vector<16x160xf32>
    %c0_12 = arith.constant 0 : index
    %c0_13 = arith.constant 0 : index
    %15 = vector.load %arg6[%c0_12, %c0_13] : memref<1x160xf32, #tpu.memory_space<vmem>>, vector<1x160xf32>
    %16 = vector.broadcast %15 : vector<1x160xf32> to vector<16x160xf32>
    %17 = arith.addf %14, %16 : vector<16x160xf32>
    %18 = vector.extract_strided_slice %17 {offsets = [0, 0], sizes = [16, 32], strides = [1, 1]} : vector<16x160xf32> to vector<16x32xf32>
    %19 = vector.extract_strided_slice %17 {offsets = [0, 32], sizes = [16, 64], strides = [1, 1]} : vector<16x160xf32> to vector<16x64xf32>
    %20 = vector.extract_strided_slice %17 {offsets = [0, 96], sizes = [16, 64], strides = [1, 1]} : vector<16x160xf32> to vector<16x64xf32>
    %21 = vector.shape_cast %9 : vector<8x64xf32> to vector<1x8x64xf32>
    "tpu.trace_start"() <{level = 10 : i32, message = "bip,bjp->bij"}> : () -> ()
    %cst_14 = arith.constant dense<0.000000e+00> : vector<1x8x16xf32>
    %22 = tpu.matmul %21, %1, %cst_14 {dimension_numbers = #tpu.dot_dimension_numbers<[2], [2], [1], [1], [0, 0, 0, 1, 1, 1], [0], [0]>} : vector<1x8x64xf32>, vector<1x16x64xf32>, vector<1x8x16xf32> -> vector<1x8x16xf32>
    "tpu.trace_stop"() : () -> ()
    %cst_15 = arith.constant 1.250000e-01 : f32
    %23 = vector.broadcast %cst_15 : f32 to vector<1x8x16xf32>
    %24 = arith.mulf %22, %23 : vector<1x8x16xf32>
    %25 = arith.negf %24 : vector<1x8x16xf32>
    %26 = math.exp %25 : vector<1x8x16xf32>
    %cst_16 = arith.constant 1.000000e+00 : f32
    %27 = vector.broadcast %cst_16 : f32 to vector<1x8x16xf32>
    %28 = arith.addf %27, %26 : vector<1x8x16xf32>
    %29 = arith.divf %27, %28 : vector<1x8x16xf32>
    %cst_17 = arith.constant 0.176776692 : f32
    %30 = vector.broadcast %cst_17 : f32 to vector<1x8x16xf32>
    %31 = arith.mulf %22, %30 : vector<1x8x16xf32>
    %32 = arith.negf %31 : vector<1x8x16xf32>
    %33 = math.exp %32 : vector<1x8x16xf32>
    %cst_18 = arith.constant 1.000000e+00 : f32
    %34 = vector.broadcast %cst_18 : f32 to vector<1x8x16xf32>
    %35 = arith.addf %34, %33 : vector<1x8x16xf32>
    %36 = arith.divf %34, %35 : vector<1x8x16xf32>
    %37 = vector.shape_cast %18 : vector<16x32xf32> to vector<1x16x32xf32>
    "tpu.trace_start"() <{level = 10 : i32, message = "bij,bjd->bid"}> : () -> ()
    %cst_19 = arith.constant dense<0.000000e+00> : vector<1x8x32xf32>
    %38 = tpu.matmul %29, %37, %cst_19 {dimension_numbers = #tpu.dot_dimension_numbers<[2], [1], [1], [2], [0, 0, 0, 1, 1, 2], [0], [0]>} : vector<1x8x16xf32>, vector<1x16x32xf32>, vector<1x8x32xf32> -> vector<1x8x32xf32>
    "tpu.trace_stop"() : () -> ()
    %39 = vector.shape_cast %10 : vector<8x64xf32> to vector<1x8x64xf32>
    "tpu.trace_start"() <{level = 10 : i32, message = "bij,bip->bjp"}> : () -> ()
    %cst_20 = arith.constant dense<0.000000e+00> : vector<1x16x64xf32>
    %40 = tpu.matmul %36, %39, %cst_20 {dimension_numbers = #tpu.dot_dimension_numbers<[1], [1], [2], [2], [0, 0, 0, 2, 1, 2], [0], [0]>} : vector<1x8x16xf32>, vector<1x8x64xf32>, vector<1x16x64xf32> -> vector<1x16x64xf32>
    "tpu.trace_stop"() : () -> ()
    %41 = vector.shape_cast %38 : vector<1x8x32xf32> to vector<8x32xf32>
    %c0_21 = arith.constant 0 : index
    %c0_22 = arith.constant 0 : index
    %42 = vector.load %arg7[%c0_21, %c0_22] : memref<32x64xf32, #tpu.memory_space<vmem>>, vector<32x64xf32>
    %cst_23 = arith.constant dense<0.000000e+00> : vector<8x64xf32>
    %43 = tpu.matmul %41, %42, %cst_23 {dimension_numbers = #tpu.dot_dimension_numbers<[1], [0], [0], [1], [0, 0, 1, 1], [], []>} : vector<8x32xf32>, vector<32x64xf32>, vector<8x64xf32> -> vector<8x64xf32>
    %c0_24 = arith.constant 0 : index
    %c0_25 = arith.constant 0 : index
    %44 = vector.load %arg8[%c0_24, %c0_25] : memref<1x64xf32, #tpu.memory_space<vmem>>, vector<1x64xf32>
    %45 = vector.broadcast %44 : vector<1x64xf32> to vector<8x64xf32>
    %46 = arith.addf %43, %45 : vector<8x64xf32>
    %47 = vector.extract_strided_slice %46 {offsets = [0, 0], sizes = [8, 32], strides = [1, 1]} : vector<8x64xf32> to vector<8x32xf32>
    %48 = arith.addf %11, %47 : vector<8x32xf32>
    %49 = arith.negf %48 : vector<8x32xf32>
    %50 = math.exp %49 : vector<8x32xf32>
    %cst_26 = arith.constant 1.000000e+00 : f32
    %51 = vector.broadcast %cst_26 : f32 to vector<8x32xf32>
    %52 = arith.addf %51, %50 : vector<8x32xf32>
    %53 = arith.divf %51, %52 : vector<8x32xf32>
    %54 = math.tanh %12 : vector<8x32xf32>
    %55 = arith.mulf %53, %54 : vector<8x32xf32>
    %cst_27 = arith.constant 1.000000e+00 : f32
    %56 = vector.broadcast %cst_27 : f32 to vector<8x32xf32>
    %57 = arith.subf %56, %53 : vector<8x32xf32>
    %58 = vector.extract_strided_slice %46 {offsets = [0, 32], sizes = [8, 32], strides = [1, 1]} : vector<8x64xf32> to vector<8x32xf32>
    %59 = math.tanh %58 : vector<8x32xf32>
    %60 = arith.mulf %57, %59 : vector<8x32xf32>
    %61 = arith.addf %55, %60 : vector<8x32xf32>
    %62 = vector.shape_cast %40 : vector<1x16x64xf32> to vector<16x64xf32>
    %c0_28 = arith.constant 0 : index
    %c0_29 = arith.constant 0 : index
    %63 = vector.load %arg9[%c0_28, %c0_29] : memref<64x128xf32, #tpu.memory_space<vmem>>, vector<64x128xf32>
    %cst_30 = arith.constant dense<0.000000e+00> : vector<16x128xf32>
    %64 = tpu.matmul %62, %63, %cst_30 {dimension_numbers = #tpu.dot_dimension_numbers<[1], [0], [0], [1], [0, 0, 1, 1], [], []>} : vector<16x64xf32>, vector<64x128xf32>, vector<16x128xf32> -> vector<16x128xf32>
    %c0_31 = arith.constant 0 : index
    %c0_32 = arith.constant 0 : index
    %65 = vector.load %arg10[%c0_31, %c0_32] : memref<1x128xf32, #tpu.memory_space<vmem>>, vector<1x128xf32>
    %66 = vector.broadcast %65 : vector<1x128xf32> to vector<16x128xf32>
    %67 = arith.addf %64, %66 : vector<16x128xf32>
    %68 = vector.extract_strided_slice %67 {offsets = [0, 0], sizes = [16, 64], strides = [1, 1]} : vector<16x128xf32> to vector<16x64xf32>
    %69 = arith.addf %19, %68 : vector<16x64xf32>
    %70 = arith.negf %69 : vector<16x64xf32>
    %71 = math.exp %70 : vector<16x64xf32>
    %cst_33 = arith.constant 1.000000e+00 : f32
    %72 = vector.broadcast %cst_33 : f32 to vector<16x64xf32>
    %73 = arith.addf %72, %71 : vector<16x64xf32>
    %74 = arith.divf %72, %73 : vector<16x64xf32>
    %75 = math.tanh %20 : vector<16x64xf32>
    %76 = arith.mulf %74, %75 : vector<16x64xf32>
    %cst_34 = arith.constant 1.000000e+00 : f32
    %77 = vector.broadcast %cst_34 : f32 to vector<16x64xf32>
    %78 = arith.subf %77, %74 : vector<16x64xf32>
    %79 = vector.extract_strided_slice %67 {offsets = [0, 64], sizes = [16, 64], strides = [1, 1]} : vector<16x128xf32> to vector<16x64xf32>
    %80 = math.tanh %79 : vector<16x64xf32>
    %81 = arith.mulf %78, %80 : vector<16x64xf32>
    %82 = arith.addf %76, %81 : vector<16x64xf32>
    %83 = vector.shape_cast %61 : vector<8x32xf32> to vector<1x8x32xf32>
    %c0_35 = arith.constant 0 : index
    %c0_36 = arith.constant 0 : index
    %c0_37 = arith.constant 0 : index
    %84 = vector.load %arg11[%c0_35, %c0_36, %c0_37] : memref<1x8x32xf32, #tpu.memory_space<vmem>>, vector<1x8x32xf32>
    tpu.vector_store %arg11[%c0_35, %c0_36, %c0_37], %83 {strides = array<i32>} : memref<1x8x32xf32, #tpu.memory_space<vmem>>, vector<1x8x32xf32>,
    %85 = vector.shape_cast %82 : vector<16x64xf32> to vector<1x16x64xf32>
    %c0_38 = arith.constant 0 : index
    %c0_39 = arith.constant 0 : index
    %c0_40 = arith.constant 0 : index
    %86 = vector.load %arg12[%c0_38, %c0_39, %c0_40] : memref<1x16x64xf32, #tpu.memory_space<vmem>>, vector<1x16x64xf32>
    tpu.vector_store %arg12[%c0_38, %c0_39, %c0_40], %85 {strides = array<i32>} : memref<1x16x64xf32, #tpu.memory_space<vmem>>, vector<1x16x64xf32>,
    return
  }
  func.func @transform_0(%arg0: i32) -> (i32, i32, i32) {
    %c0_i32 = arith.constant 0 : i32
    %c0_i32_0 = arith.constant 0 : i32
    %c0_i32_1 = arith.constant 0 : i32
    return %arg0, %c0_i32, %c0_i32_0 : i32, i32, i32
  }
  func.func @transform_1(%arg0: i32) -> (i32, i32, i32) {
    %c0_i32 = arith.constant 0 : i32
    %c0_i32_0 = arith.constant 0 : i32
    %c0_i32_1 = arith.constant 0 : i32
    return %arg0, %c0_i32, %c0_i32_0 : i32, i32, i32
  }
  func.func @transform_2(%arg0: i32) -> (i32, i32) {
    %c0_i32 = arith.constant 0 : i32
    %c0_i32_0 = arith.constant 0 : i32
    %c0_i32_1 = arith.constant 0 : i32
    return %c0_i32, %c0_i32_0 : i32, i32
  }
  func.func @transform_3(%arg0: i32) -> (i32, i32) {
    %c0_i32 = arith.constant 0 : i32
    %c0_i32_0 = arith.constant 0 : i32
    %c0_i32_1 = arith.constant 0 : i32
    return %c0_i32, %c0_i32_0 : i32, i32
  }
  func.func @transform_4(%arg0: i32) -> (i32, i32) {
    %c0_i32 = arith.constant 0 : i32
    %c0_i32_0 = arith.constant 0 : i32
    %c0_i32_1 = arith.constant 0 : i32
    return %c0_i32, %c0_i32_0 : i32, i32
  }
  func.func @transform_5(%arg0: i32) -> (i32, i32) {
    %c0_i32 = arith.constant 0 : i32
    %c0_i32_0 = arith.constant 0 : i32
    %c0_i32_1 = arith.constant 0 : i32
    return %c0_i32, %c0_i32_0 : i32, i32
  }
  func.func @transform_6(%arg0: i32) -> (i32, i32) {
    %c0_i32 = arith.constant 0 : i32
    %c0_i32_0 = arith.constant 0 : i32
    %c0_i32_1 = arith.constant 0 : i32
    return %c0_i32, %c0_i32_0 : i32, i32
  }
  func.func @transform_7(%arg0: i32) -> (i32, i32) {
    %c0_i32 = arith.constant 0 : i32
    %c0_i32_0 = arith.constant 0 : i32
    %c0_i32_1 = arith.constant 0 : i32
    return %c0_i32, %c0_i32_0 : i32, i32
  }
  func.func @transform_8(%arg0: i32) -> (i32, i32) {
    %c0_i32 = arith.constant 0 : i32
    %c0_i32_0 = arith.constant 0 : i32
    %c0_i32_1 = arith.constant 0 : i32
    return %c0_i32, %c0_i32_0 : i32, i32
  }
  func.func @transform_9(%arg0: i32) -> (i32, i32) {
    %c0_i32 = arith.constant 0 : i32
    %c0_i32_0 = arith.constant 0 : i32
    %c0_i32_1 = arith.constant 0 : i32
    return %c0_i32, %c0_i32_0 : i32, i32
  }
  func.func @transform_10(%arg0: i32) -> (i32, i32, i32) {
    %c0_i32 = arith.constant 0 : i32
    %c0_i32_0 = arith.constant 0 : i32
    %c0_i32_1 = arith.constant 0 : i32
    return %arg0, %c0_i32, %c0_i32_0 : i32, i32, i32
  }
  func.func @transform_11(%arg0: i32) -> (i32, i32, i32) {
    %c0_i32 = arith.constant 0 : i32
    %c0_i32_0 = arith.constant 0 : i32
    %c0_i32_1 = arith.constant 0 : i32
    return %arg0, %c0_i32, %c0_i32_0 : i32, i32, i32
  }
}

</mosaic_0001>

<llo_original>
// kernel: tpu_custom_call.1
$region0: #{tpu_custom_call.1}
  #allocation0 [shape = 'u32[]', space=smem, size = 0x4, offset = 0x4, fixed_abs, tag = 'smem constant byte address 0x4 - core index']
  #allocation1 [shape = 'u32[72,128]{1,0:T(1,128)}', space=vmem, size = 0x9000, scoped, tag = 'internal scratch']
  %s0 = inlined_call_operand.hbm [shape: f32[2,8,32], index: 0, kind: input, shape index: {}]
  %s1 = inlined_call_operand.hbm [shape: f32[2,16,64], index: 1, kind: input, shape index: {}]
  %s2 = inlined_call_operand.hbm [shape: f32[32,192], index: 2, kind: input, shape index: {}]
  %s3 = inlined_call_operand.vmem [shape: f32[1,192], index: 3, kind: input, shape index: {}]
  %s4 = inlined_call_operand.hbm [shape: f32[64,160], index: 4, kind: input, shape index: {}]
  %s5 = inlined_call_operand.vmem [shape: f32[1,160], index: 5, kind: input, shape index: {}]
  %s6 = inlined_call_operand.hbm [shape: f32[32,64], index: 6, kind: input, shape index: {}]
  %s7 = inlined_call_operand.vmem [shape: f32[1,64], index: 7, kind: input, shape index: {}]
  %s8 = inlined_call_operand.hbm [shape: f32[64,128], index: 8, kind: input, shape index: {}]
  %s9 = inlined_call_operand.vmem [shape: f32[1,128], index: 9, kind: input, shape index: {}]
  %s10 = inlined_call_operand.hbm [shape: f32[2,8,32], index: 10, kind: output, shape index: {0}]
  %s11 = inlined_call_operand.hbm [shape: f32[2,16,64], index: 11, kind: output, shape index: {1}]
  %12 = xla_tuple %s10, %s11
  %s13 = sld [smem:[#allocation0]]
  $region105: #{tpu_custom_call.1} parent=0
    _
  %s15 = ssub.s32 1, %s13
  %s16 = scalar_select 0, %s15, %s13
  $region1: #{tpu_custom_call.1} parent=0
    #allocation2 [shape = 'u8[8192]{0}', space=vmem, size = 0x2000, scoped, tag = 'input window, operand 0']
    #allocation3 [shape = 's32[2]{0}', space=sflag, size = 0x8, scoped, tag = 'scoped memory for tpu_custom_call.1']
    #allocation4 [shape = 's32[2]{0}', space=sflag, size = 0x8, scoped, tag = 'scoped memory for tpu_custom_call.1']
    #allocation5 [shape = 'u8[16384]{0}', space=vmem, size = 0x4000, scoped, tag = 'input window, operand 1']
    #allocation6 [shape = 's32[2]{0}', space=sflag, size = 0x8, scoped, tag = 'scoped memory for tpu_custom_call.1']
    #allocation7 [shape = 'u8[32768]{0}', space=vmem, size = 0x8000, scoped, tag = 'input window, operand 2, single buffered']
    #allocation8 [shape = 'u8[65536]{0}', space=vmem, size = 0x10000, scoped, tag = 'input window, operand 4, single buffered']
    #allocation9 [shape = 's32[1]{0}', space=sflag, size = 0x4, scoped, tag = 'scoped memory for tpu_custom_call.1']
    #allocation10 [shape = 'u8[16384]{0}', space=vmem, size = 0x4000, scoped, tag = 'input window, operand 6, single buffered']
    #allocation11 [shape = 'u8[32768]{0}', space=vmem, size = 0x8000, scoped, tag = 'input window, operand 8, single buffered']
    #allocation12 [shape = 's32[1]{0}', space=sflag, size = 0x4, scoped, tag = 'scoped memory for tpu_custom_call.1']
    #allocation13 [shape = 'u8[8192]{0}', space=vmem, size = 0x2000, scoped, tag = 'output window, operand 0']
    #allocation14 [shape = 'u8[16384]{0}', space=vmem, size = 0x4000, scoped, tag = 'output window, operand 1']
    #allocation15 [shape = 's32[2]{0}', space=sflag, size = 0x8, scoped, tag = 'scoped memory for tpu_custom_call.1']
    %17 = vsyncpa [#allocation3], 0
    %s18 = scalar_lea.sflag [#allocation3], 1
    %19 = vsyncpa %s18, 0
    %20 = vsyncpa [#allocation6], 0
    %s21 = scalar_lea.sflag [#allocation6], 1
    %22 = vsyncpa %s21, 0
    %23 = vsyncpa [#allocation9], 0
    %24 = vsyncpa [#allocation12], 0
    %25 = vsyncpa [#allocation4], 0
    %s26 = scalar_lea.sflag [#allocation4], 1
    %27 = vsyncpa %s26, 0
    %28 = vsyncpa [#allocation15], 0
    %s29 = scalar_lea.sflag [#allocation15], 1
    %30 = vsyncpa %s29, 0
    loop: start=0, step=1, limit=4
    $region2: #{tpu_custom_call.1} parent=1 // loop_pre_header
      _
    $region3: #{tpu_custom_call.1} parent=1 // loop_header
      %s32 = sphi 0, %s36
      %p33 = scmp.ge.s32.totalorder %s32, 4
      %s42 = sphi 0, %s44
      %s45 = sphi 0, %s42
      %s46 = sphi 0, %s45
      %s62 = sphi 0, %s46
      %s68 = sphi 0, %s70
      %s71 = sphi 0, %s68
      %s72 = sphi 0, %s71
      %s88 = sphi 0, %s72
      %s92 = sphi 0, %s92
      %s94 = sphi 0, %s92
      %s95 = sphi 0, %s94
      %s109 = sphi 0, %s95
      %s113 = sphi 0, %s113
      %s115 = sphi 0, %s113
      %s116 = sphi 0, %s115
      %s130 = sphi 0, %s116
      %s134 = sphi 0, %s134
      %s136 = sphi 0, %s134
      %s137 = sphi 0, %s136
      %s151 = sphi 0, %s137
      %s155 = sphi 0, %s155
      %s157 = sphi 0, %s155
      %s158 = sphi 0, %s157
      %s172 = sphi 0, %s158
      %s176 = sphi 0, %s176
      %s178 = sphi 0, %s176
      %s179 = sphi 0, %s178
      %s193 = sphi 0, %s179
      %s197 = sphi 0, %s197
      %s199 = sphi 0, %s197
      %s200 = sphi 0, %s199
      %s214 = sphi 0, %s200
      %s218 = sphi 0, %s218
      %s220 = sphi 0, %s218
      %s221 = sphi 0, %s220
      %s235 = sphi 0, %s221
      %s239 = sphi 0, %s239
      %s241 = sphi 0, %s239
      %s242 = sphi 0, %s241
      %s256 = sphi 0, %s242
      %s262 = sphi 0, %s264
      %s265 = sphi 0, %s262
      %s266 = sphi 0, %s265
      %s282 = sphi 0, %s266
      %s288 = sphi 0, %s290
      %s291 = sphi 0, %s288
      %s292 = sphi 0, %s291
      %s308 = sphi 0, %s292
    $region4: #{tpu_custom_call.1} parent=1 // loop_header_branch
      %35 = sbr.rel (%p33) target = $region8
    $region5: #{tpu_custom_call.1} parent=1 // loop_body
      %s37 = ssub.s32 %s32, 1
      %s38 = ssub.s32 %s32, 2
      %s39 = sadd.s32 %s32, 1
      %s40 = ssub.s32 %s32, %s39
      %p41 = scmp.eq.s32.totalorder %s40, 0
      %s43 = sadd.s32 %s42, 1
      %s44 = scalar_select %p41, %s42, %s43
      %p47 = pneg %p41
      %p48 = scmp.eq.s32.totalorder %s32, 1
      %p49 = por %p47, %p48
      %p50 = scmp.ne.s32.totalorder %s42, %s45
      %p51 = scmp.eq.s32.totalorder %s32, 0
      %p52 = por %p50, %p51
      %p53 = scmp.ne.s32.totalorder %s42, %s45
      %p54 = scmp.eq.s32.totalorder %s37, 1
      %p55 = por %p53, %p54
      %p56 = scmp.ne.s32.totalorder %s45, %s46
      %p57 = scmp.eq.s32.totalorder %s37, 0
      %p58 = por %p56, %p57
      %p59 = scmp.ne.s32.totalorder %s45, %s46
      %p60 = scmp.eq.s32.totalorder %s38, 1
      %p61 = por %p59, %p60
      %p63 = scmp.ne.s32.totalorder %s46, %s62
      %p64 = scmp.eq.s32.totalorder %s38, 0
      %p65 = por %p63, %p64
      %s66 = ssub.s32 %s32, %s39
      %p67 = scmp.eq.s32.totalorder %s66, 0
      %s69 = sadd.s32 %s68, 1
      %s70 = scalar_select %p67, %s68, %s69
      %p73 = pneg %p67
      %p74 = scmp.eq.s32.totalorder %s32, 1
      %p75 = por %p73, %p74
      %p76 = scmp.ne.s32.totalorder %s68, %s71
      %p77 = scmp.eq.s32.totalorder %s32, 0
      %p78 = por %p76, %p77
      %p79 = scmp.ne.s32.totalorder %s68, %s71
      %p80 = scmp.eq.s32.totalorder %s37, 1
      %p81 = por %p79, %p80
      %p82 = scmp.ne.s32.totalorder %s71, %s72
      %p83 = scmp.eq.s32.totalorder %s37, 0
      %p84 = por %p82, %p83
      %p85 = scmp.ne.s32.totalorder %s71, %s72
      %p86 = scmp.eq.s32.totalorder %s38, 1
      %p87 = por %p85, %p86
      %p89 = scmp.ne.s32.totalorder %s72, %s88
      %p90 = scmp.eq.s32.totalorder %s38, 0
      %p91 = por %p89, %p90
      %s93 = sadd.s32 %s92, 1
      %p96 = scmp.eq.s32.totalorder %s32, 1
      %p97 = scmp.ne.s32.totalorder %s92, %s94
      %p98 = scmp.eq.s32.totalorder %s32, 0
      %p99 = por %p97, %p98
      %p100 = scmp.ne.s32.totalorder %s92, %s94
      %p101 = scmp.eq.s32.totalorder %s37, 1
      %p102 = por %p100, %p101
      %p103 = scmp.ne.s32.totalorder %s94, %s95
      %p104 = scmp.eq.s32.totalorder %s37, 0
      %p105 = por %p103, %p104
      %p106 = scmp.ne.s32.totalorder %s94, %s95
      %p107 = scmp.eq.s32.totalorder %s38, 1
      %p108 = por %p106, %p107
      %p110 = scmp.ne.s32.totalorder %s95, %s109
      %p111 = scmp.eq.s32.totalorder %s38, 0
      %p112 = por %p110, %p111
      %s114 = sadd.s32 %s113, 1
      %p117 = scmp.eq.s32.totalorder %s32, 1
      %p118 = scmp.ne.s32.totalorder %s113, %s115
      %p119 = scmp.eq.s32.totalorder %s32, 0
      %p120 = por %p118, %p119
      %p121 = scmp.ne.s32.totalorder %s113, %s115
      %p122 = scmp.eq.s32.totalorder %s37, 1
      %p123 = por %p121, %p122
      %p124 = scmp.ne.s32.totalorder %s115, %s116
      %p125 = scmp.eq.s32.totalorder %s37, 0
      %p126 = por %p124, %p125
      %p127 = scmp.ne.s32.totalorder %s115, %s116
      %p128 = scmp.eq.s32.totalorder %s38, 1
      %p129 = por %p127, %p128
      %p131 = scmp.ne.s32.totalorder %s116, %s130
      %p132 = scmp.eq.s32.totalorder %s38, 0
      %p133 = por %p131, %p132
      %s135 = sadd.s32 %s134, 1
      %p138 = scmp.eq.s32.totalorder %s32, 1
      %p139 = scmp.ne.s32.totalorder %s134, %s136
      %p140 = scmp.eq.s32.totalorder %s32, 0
      %p141 = por %p139, %p140
      %p142 = scmp.ne.s32.totalorder %s134, %s136
      %p143 = scmp.eq.s32.totalorder %s37, 1
      %p144 = por %p142, %p143
      %p145 = scmp.ne.s32.totalorder %s136, %s137
      %p146 = scmp.eq.s32.totalorder %s37, 0
      %p147 = por %p145, %p146
      %p148 = scmp.ne.s32.totalorder %s136, %s137
      %p149 = scmp.eq.s32.totalorder %s38, 1
      %p150 = por %p148, %p149
      %p152 = scmp.ne.s32.totalorder %s137, %s151
      %p153 = scmp.eq.s32.totalorder %s38, 0
      %p154 = por %p152, %p153
      %s156 = sadd.s32 %s155, 1
      %p159 = scmp.eq.s32.totalorder %s32, 1
      %p160 = scmp.ne.s32.totalorder %s155, %s157
      %p161 = scmp.eq.s32.totalorder %s32, 0
      %p162 = por %p160, %p161
      %p163 = scmp.ne.s32.totalorder %s155, %s157
      %p164 = scmp.eq.s32.totalorder %s37, 1
      %p165 = por %p163, %p164
      %p166 = scmp.ne.s32.totalorder %s157, %s158
      %p167 = scmp.eq.s32.totalorder %s37, 0
      %p168 = por %p166, %p167
      %p169 = scmp.ne.s32.totalorder %s157, %s158
      %p170 = scmp.eq.s32.totalorder %s38, 1
      %p171 = por %p169, %p170
      %p173 = scmp.ne.s32.totalorder %s158, %s172
      %p174 = scmp.eq.s32.totalorder %s38, 0
      %p175 = por %p173, %p174
      %s177 = sadd.s32 %s176, 1
      %p180 = scmp.eq.s32.totalorder %s32, 1
      %p181 = scmp.ne.s32.totalorder %s176, %s178
      %p182 = scmp.eq.s32.totalorder %s32, 0
      %p183 = por %p181, %p182
      %p184 = scmp.ne.s32.totalorder %s176, %s178
      %p185 = scmp.eq.s32.totalorder %s37, 1
      %p186 = por %p184, %p185
      %p187 = scmp.ne.s32.totalorder %s178, %s179
      %p188 = scmp.eq.s32.totalorder %s37, 0
      %p189 = por %p187, %p188
      %p190 = scmp.ne.s32.totalorder %s178, %s179
      %p191 = scmp.eq.s32.totalorder %s38, 1
      %p192 = por %p190, %p191
      %p194 = scmp.ne.s32.totalorder %s179, %s193
      %p195 = scmp.eq.s32.totalorder %s38, 0
      %p196 = por %p194, %p195
      %s198 = sadd.s32 %s197, 1
      %p201 = scmp.eq.s32.totalorder %s32, 1
      %p202 = scmp.ne.s32.totalorder %s197, %s199
      %p203 = scmp.eq.s32.totalorder %s32, 0
      %p204 = por %p202, %p203
      %p205 = scmp.ne.s32.totalorder %s197, %s199
      %p206 = scmp.eq.s32.totalorder %s37, 1
      %p207 = por %p205, %p206
      %p208 = scmp.ne.s32.totalorder %s199, %s200
      %p209 = scmp.eq.s32.totalorder %s37, 0
      %p210 = por %p208, %p209
      %p211 = scmp.ne.s32.totalorder %s199, %s200
      %p212 = scmp.eq.s32.totalorder %s38, 1
      %p213 = por %p211, %p212
      %p215 = scmp.ne.s32.totalorder %s200, %s214
      %p216 = scmp.eq.s32.totalorder %s38, 0
      %p217 = por %p215, %p216
      %s219 = sadd.s32 %s218, 1
      %p222 = scmp.eq.s32.totalorder %s32, 1
      %p223 = scmp.ne.s32.totalorder %s218, %s220
      %p224 = scmp.eq.s32.totalorder %s32, 0
      %p225 = por %p223, %p224
      %p226 = scmp.ne.s32.totalorder %s218, %s220
      %p227 = scmp.eq.s32.totalorder %s37, 1
      %p228 = por %p226, %p227
      %p229 = scmp.ne.s32.totalorder %s220, %s221
      %p230 = scmp.eq.s32.totalorder %s37, 0
      %p231 = por %p229, %p230
      %p232 = scmp.ne.s32.totalorder %s220, %s221
      %p233 = scmp.eq.s32.totalorder %s38, 1
      %p234 = por %p232, %p233
      %p236 = scmp.ne.s32.totalorder %s221, %s235
      %p237 = scmp.eq.s32.totalorder %s38, 0
      %p238 = por %p236, %p237
      %s240 = sadd.s32 %s239, 1
      %p243 = scmp.eq.s32.totalorder %s32, 1
      %p244 = scmp.ne.s32.totalorder %s239, %s241
      %p245 = scmp.eq.s32.totalorder %s32, 0
      %p246 = por %p244, %p245
      %p247 = scmp.ne.s32.totalorder %s239, %s241
      %p248 = scmp.eq.s32.totalorder %s37, 1
      %p249 = por %p247, %p248
      %p250 = scmp.ne.s32.totalorder %s241, %s242
      %p251 = scmp.eq.s32.totalorder %s37, 0
      %p252 = por %p250, %p251
      %p253 = scmp.ne.s32.totalorder %s241, %s242
      %p254 = scmp.eq.s32.totalorder %s38, 1
      %p255 = por %p253, %p254
      %p257 = scmp.ne.s32.totalorder %s242, %s256
      %p258 = scmp.eq.s32.totalorder %s38, 0
      %p259 = por %p257, %p258
      %s260 = ssub.s32 %s32, %s39
      %p261 = scmp.eq.s32.totalorder %s260, 0
      %s263 = sadd.s32 %s262, 1
      %s264 = scalar_select %p261, %s262, %s263
      %p267 = pneg %p261
      %p268 = scmp.eq.s32.totalorder %s32, 1
      %p269 = por %p267, %p268
      %p270 = scmp.ne.s32.totalorder %s262, %s265
      %p271 = scmp.eq.s32.totalorder %s32, 0
      %p272 = por %p270, %p271
      %p273 = scmp.ne.s32.totalorder %s262, %s265
      %p274 = scmp.eq.s32.totalorder %s37, 1
      %p275 = por %p273, %p274
      %p276 = scmp.ne.s32.totalorder %s265, %s266
      %p277 = scmp.eq.s32.totalorder %s37, 0
      %p278 = por %p276, %p277
      %p279 = scmp.ne.s32.totalorder %s265, %s266
      %p280 = scmp.eq.s32.totalorder %s38, 1
      %p281 = por %p279, %p280
      %p283 = scmp.ne.s32.totalorder %s266, %s282
      %p284 = scmp.eq.s32.totalorder %s38, 0
      %p285 = por %p283, %p284
      %s286 = ssub.s32 %s32, %s39
      %p287 = scmp.eq.s32.totalorder %s286, 0
      %s289 = sadd.s32 %s288, 1
      %s290 = scalar_select %p287, %s288, %s289
      %p293 = pneg %p287
      %p294 = scmp.eq.s32.totalorder %s32, 1
      %p295 = por %p293, %p294
      %p296 = scmp.ne.s32.totalorder %s288, %s291
      %p297 = scmp.eq.s32.totalorder %s32, 0
      %p298 = por %p296, %p297
      %p299 = scmp.ne.s32.totalorder %s288, %s291
      %p300 = scmp.eq.s32.totalorder %s37, 1
      %p301 = por %p299, %p300
      %p302 = scmp.ne.s32.totalorder %s291, %s292
      %p303 = scmp.eq.s32.totalorder %s37, 0
      %p304 = por %p302, %p303
      %p305 = scmp.ne.s32.totalorder %s291, %s292
      %p306 = scmp.eq.s32.totalorder %s38, 1
      %p307 = por %p305, %p306
      %p309 = scmp.ne.s32.totalorder %s292, %s308
      %p310 = scmp.eq.s32.totalorder %s38, 0
      %p311 = por %p309, %p310
      %p312 = scmp.le.s32.totalorder 1, %s32
      %p313 = scmp.lt.s32.totalorder %s32, 3
      %p314 = pnand %p312, %p313
      %p315 = pneg %p314
      // Predicated region
      $region9: #{tpu_custom_call.1} parent=5 // pred_check
        _
      $region10: #{tpu_custom_call.1} parent=5 // pred_check_branch
        %317 = sbr.rel (%p314) target = $region12
      $region11: #{tpu_custom_call.1} parent=5 // pred_region
        %s318 = ssub.s32 %s32, 1
        // Predicated region
        $region13: #{tpu_custom_call.1} parent=11 // pred_check
          %p319 = pneg %p105
        $region14: #{tpu_custom_call.1} parent=11 // pred_check_branch
          %321 = sbr.rel (%p319) target = $region16
        $region15: #{tpu_custom_call.1} parent=11 // pred_region
          %323 = vsyncadd [#allocation6], 0
          %s324 = sshll.u32 %s2, 4
          %s325 = int_to_ptr.hbm [resolvable:$true] %s324
          %s326 = sshll.u32 [#allocation7], 4
          %s327 = int_to_ptr.vmem [resolvable:$true] %s326
          %332 = dma.hbm_to_vmem [thread:$0]  %s325, 1024, %s327, [#allocation6], 256, 256, 16
        $region16: #{tpu_custom_call.1} parent=11 // pred_fallthru
          _
        // Predicated region
        $region17: #{tpu_custom_call.1} parent=11 // pred_check
          %p333 = pneg %p126
        $region18: #{tpu_custom_call.1} parent=11 // pred_check_branch
          %335 = sbr.rel (%p333) target = $region20
        $region19: #{tpu_custom_call.1} parent=11 // pred_region
          _
        $region20: #{tpu_custom_call.1} parent=11 // pred_fallthru
          _
        // Predicated region
        $region21: #{tpu_custom_call.1} parent=11 // pred_check
          %p336 = pneg %p147
        $region22: #{tpu_custom_call.1} parent=11 // pred_check_branch
          %338 = sbr.rel (%p336) target = $region24
        $region23: #{tpu_custom_call.1} parent=11 // pred_region
          %340 = vsyncadd [#allocation9], 0
          %s341 = sshll.u32 %s4, 4
          %s342 = int_to_ptr.hbm [resolvable:$true] %s341
          %s343 = sshll.u32 [#allocation8], 4
          %s344 = int_to_ptr.vmem [resolvable:$true] %s343
          %349 = dma.hbm_to_vmem [thread:$0]  %s342, 2048, %s344, [#allocation9], 256, 256, 16
        $region24: #{tpu_custom_call.1} parent=11 // pred_fallthru
          _
        // Predicated region
        $region25: #{tpu_custom_call.1} parent=11 // pred_check
          %p350 = pneg %p168
        $region26: #{tpu_custom_call.1} parent=11 // pred_check_branch
          %352 = sbr.rel (%p350) target = $region28
        $region27: #{tpu_custom_call.1} parent=11 // pred_region
          _
        $region28: #{tpu_custom_call.1} parent=11 // pred_fallthru
          _
        // Predicated region
        $region29: #{tpu_custom_call.1} parent=11 // pred_check
          %p353 = pneg %p189
        $region30: #{tpu_custom_call.1} parent=11 // pred_check_branch
          %355 = sbr.rel (%p353) target = $region32
        $region31: #{tpu_custom_call.1} parent=11 // pred_region
          %357 = vsyncadd [#allocation9], 0
          %s358 = sshll.u32 %s6, 4
          %s359 = int_to_ptr.hbm [resolvable:$true] %s358
          %s360 = sshll.u32 [#allocation10], 4
          %s361 = int_to_ptr.vmem [resolvable:$true] %s360
          %366 = dma.hbm_to_vmem [thread:$0]  %s359, 512, %s361, [#allocation9], 128, 128, 8
        $region32: #{tpu_custom_call.1} parent=11 // pred_fallthru
          _
        // Predicated region
        $region33: #{tpu_custom_call.1} parent=11 // pred_check
          %p367 = pneg %p210
        $region34: #{tpu_custom_call.1} parent=11 // pred_check_branch
          %369 = sbr.rel (%p367) target = $region36
        $region35: #{tpu_custom_call.1} parent=11 // pred_region
          _
        $region36: #{tpu_custom_call.1} parent=11 // pred_fallthru
          _
        // Predicated region
        $region37: #{tpu_custom_call.1} parent=11 // pred_check
          %p370 = pneg %p231
        $region38: #{tpu_custom_call.1} parent=11 // pred_check_branch
          %372 = sbr.rel (%p370) target = $region40
        $region39: #{tpu_custom_call.1} parent=11 // pred_region
          %374 = vsyncadd [#allocation12], 0
          %s375 = sshll.u32 %s8, 4
          %s376 = int_to_ptr.hbm [resolvable:$true] %s375
          %s377 = sshll.u32 [#allocation11], 4
          %s378 = int_to_ptr.vmem [resolvable:$true] %s377
          %383 = dma.hbm_to_vmem [thread:$0]  %s376, 1024, %s378, [#allocation12], 128, 128, 8
        $region40: #{tpu_custom_call.1} parent=11 // pred_fallthru
          _
        // Predicated region
        $region41: #{tpu_custom_call.1} parent=11 // pred_check
          %p384 = pneg %p252
        $region42: #{tpu_custom_call.1} parent=11 // pred_check_branch
          %386 = sbr.rel (%p384) target = $region44
        $region43: #{tpu_custom_call.1} parent=11 // pred_region
          _
        $region44: #{tpu_custom_call.1} parent=11 // pred_fallthru
          _
      $region12: #{tpu_custom_call.1} parent=5 // pred_fallthru
        _
      %p387 = scmp.lt.s32.totalorder %s32, 2
      // Predicated region
      $region45: #{tpu_custom_call.1} parent=5 // pred_check
        %p388 = pneg %p387
      $region46: #{tpu_custom_call.1} parent=5 // pred_check_branch
        %390 = sbr.rel (%p388) target = $region48
      $region47: #{tpu_custom_call.1} parent=5 // pred_region
        // Predicated region
        $region49: #{tpu_custom_call.1} parent=47 // pred_check
          %p391 = pneg %p52
        $region50: #{tpu_custom_call.1} parent=47 // pred_check_branch
          %393 = sbr.rel (%p391) target = $region52
        $region51: #{tpu_custom_call.1} parent=47 // pred_region
          %s394 = sand.u32 %s42, 1
          %s395 = scalar_lea.sflag [#allocation3], %s394
          %s396 = sand.u32 %s42, 1
          %s397 = smul.addr %s396, 8
          %s398 = scalar_lea.vmem [#allocation2], %s397
          %400 = vsyncadd %s395, 0
          %s401 = smul.addr %s32, 8
          %s402 = scalar_lea.hbm %s0, %s401
          %s404 = sshll.u32 %s402, 4
          %s405 = int_to_ptr.hbm [resolvable:$true] %s404
          %s406 = sshll.u32 %s398, 4
          %s407 = int_to_ptr.vmem [resolvable:$true] %s406
          %409 = dma.hbm_to_vmem [thread:$0]  %s405, 128, %s407, %s395
        $region52: #{tpu_custom_call.1} parent=47 // pred_fallthru
          _
        // Predicated region
        $region53: #{tpu_custom_call.1} parent=47 // pred_check
          %p410 = pneg %p78
        $region54: #{tpu_custom_call.1} parent=47 // pred_check_branch
          %412 = sbr.rel (%p410) target = $region56
        $region55: #{tpu_custom_call.1} parent=47 // pred_region
          %s413 = sand.u32 %s32, 1
          %s414 = scalar_lea.sflag [#allocation6], %s413
          %s415 = sand.u32 %s68, 1
          %s416 = smul.addr %s415, 16
          %s417 = scalar_lea.vmem [#allocation5], %s416
          %419 = vsyncadd %s414, 0
          %s420 = smul.addr %s32, 2
          %s421 = smul.addr %s420, 8
          %s422 = scalar_lea.hbm %s1, %s421
          %s423 = sshll.u32 %s422, 4
          %s424 = int_to_ptr.hbm [resolvable:$true] %s423
          %s425 = sshll.u32 %s417, 4
          %s426 = int_to_ptr.vmem [resolvable:$true] %s425
          %431 = dma.hbm_to_vmem [thread:$0]  %s424, 256, %s426, %s414, 128, 128, 8
        $region56: #{tpu_custom_call.1} parent=47 // pred_fallthru
          _
      $region48: #{tpu_custom_call.1} parent=5 // pred_fallthru
        _
      %p432 = scmp.le.s32.totalorder 1, %s32
      %p433 = scmp.lt.s32.totalorder %s32, 3
      %p434 = pnand %p432, %p433
      %p435 = pneg %p434
      // Predicated region
      $region57: #{tpu_custom_call.1} parent=5 // pred_check
        _
      $region58: #{tpu_custom_call.1} parent=5 // pred_check_branch
        %437 = sbr.rel (%p434) target = $region60
      $region59: #{tpu_custom_call.1} parent=5 // pred_region
        %s438 = ssub.s32 %s32, 1
        %s439 = sand.u32 %s45, 1
        %s440 = scalar_lea.sflag [#allocation3], %s439
        %s441 = sand.u32 %s45, 1
        %s442 = smul.addr %s441, 8
        %s443 = scalar_lea.vmem [#allocation2], %s442
        // Predicated region
        $region61: #{tpu_custom_call.1} parent=59 // pred_check
          %p444 = pneg %p58
        $region62: #{tpu_custom_call.1} parent=59 // pred_check_branch
          %446 = sbr.rel (%p444) target = $region64
        $region63: #{tpu_custom_call.1} parent=59 // pred_region
          %448 = dma.done %s440, 128
        $region64: #{tpu_custom_call.1} parent=59 // pred_fallthru
          _
        %s449 = sand.u32 %s37, 1
        %s450 = scalar_lea.sflag [#allocation6], %s449
        %s451 = sand.u32 %s71, 1
        %s452 = smul.addr %s451, 16
        %s453 = scalar_lea.vmem [#allocation5], %s452
        // Predicated region
        $region65: #{tpu_custom_call.1} parent=59 // pred_check
          %p454 = pneg %p84
        $region66: #{tpu_custom_call.1} parent=59 // pred_check_branch
          %456 = sbr.rel (%p454) target = $region68
        $region67: #{tpu_custom_call.1} parent=59 // pred_region
          %458 = dma.done %s450, 256
        $region68: #{tpu_custom_call.1} parent=59 // pred_fallthru
          _
        // Predicated region
        $region69: #{tpu_custom_call.1} parent=59 // pred_check
          %p459 = pneg %p105
        $region70: #{tpu_custom_call.1} parent=59 // pred_check_branch
          %461 = sbr.rel (%p459) target = $region72
        $region71: #{tpu_custom_call.1} parent=59 // pred_region
          %463 = dma.done [#allocation6], 1024
        $region72: #{tpu_custom_call.1} parent=59 // pred_fallthru
          _
        // Predicated region
        $region73: #{tpu_custom_call.1} parent=59 // pred_check
          %p464 = pneg %p147
        $region74: #{tpu_custom_call.1} parent=59 // pred_check_branch
          %466 = sbr.rel (%p464) target = $region76
        $region75: #{tpu_custom_call.1} parent=59 // pred_region
          %468 = dma.done [#allocation9], 2048
        $region76: #{tpu_custom_call.1} parent=59 // pred_fallthru
          _
        // Predicated region
        $region77: #{tpu_custom_call.1} parent=59 // pred_check
          %p469 = pneg %p189
        $region78: #{tpu_custom_call.1} parent=59 // pred_check_branch
          %471 = sbr.rel (%p469) target = $region80
        $region79: #{tpu_custom_call.1} parent=59 // pred_region
          %473 = dma.done [#allocation9], 512
        $region80: #{tpu_custom_call.1} parent=59 // pred_fallthru
          _
        // Predicated region
        $region81: #{tpu_custom_call.1} parent=59 // pred_check
          %p474 = pneg %p231
        $region82: #{tpu_custom_call.1} parent=59 // pred_check_branch
          %476 = sbr.rel (%p474) target = $region84
        $region83: #{tpu_custom_call.1} parent=59 // pred_region
          %478 = dma.done [#allocation12], 1024
        $region84: #{tpu_custom_call.1} parent=59 // pred_fallthru
          _
        %s479 = sand.u32 %s45, 1
        %s480 = scalar_lea.sflag [#allocation3], %s479
        %s481 = sand.u32 %s45, 1
        %s482 = smul.addr %s481, 8
        %s483 = scalar_lea.vmem [#allocation2], %s482
        %p484 = pneg %p58
        %p485 = pneg %p55
        %s486 = sand.u32 %s37, 1
        %s487 = scalar_lea.sflag [#allocation6], %s486
        %s488 = sand.u32 %s71, 1
        %s489 = smul.addr %s488, 16
        %s490 = scalar_lea.vmem [#allocation5], %s489
        %p491 = pneg %p84
        %p492 = pneg %p81
        %p493 = pneg %p105
        %p494 = pneg %p102
        %p495 = pneg %p126
        %p496 = pneg %p123
        %p497 = pneg %p147
        %p498 = pneg %p144
        %p499 = pneg %p168
        %p500 = pneg %p165
        %p501 = pneg %p189
        %p502 = pneg %p186
        %p503 = pneg %p210
        %p504 = pneg %p207
        %p505 = pneg %p231
        %p506 = pneg %p228
        %p507 = pneg %p252
        %p508 = pneg %p249
        %p509 = pneg %p278
        %p510 = pneg %p275
        %s511 = sand.u32 %s265, 1
        %s512 = scalar_lea.sflag [#allocation4], %s511
        %s513 = sand.u32 %s265, 1
        %s514 = smul.addr %s513, 8
        %s515 = scalar_lea.vmem [#allocation13], %s514
        %p516 = pneg %p304
        %p517 = pneg %p301
        %s518 = sand.u32 %s291, 1
        %s519 = scalar_lea.sflag [#allocation15], %s518
        %s520 = sand.u32 %s291, 1
        %s521 = smul.addr %s520, 16
        %s522 = scalar_lea.vmem [#allocation14], %s521
        %v523 = vld [vmem:[%s443] sm:$0xff]
        %v524 = vld [vmem:[%s453] sm:$0xff]
        %v525 = vld [vmem:[%s453 + $0x8] sm:$0xff]
        %v526 = vld [vmem:[#allocation7] sm:$0xff]
        %v527 = vld [vmem:[#allocation7 + $0x8] sm:$0xff]
        %v528 = vld [vmem:[#allocation7 + $0x10] sm:$0xff]
        %v529 = vld [vmem:[#allocation7 + $0x18] sm:$0xff]
        %v530 = vld [vmem:[#allocation7 + $0x20] sm:$0xff]
        %v531 = vld [vmem:[#allocation7 + $0x28] sm:$0xff]
        %v532 = vld [vmem:[#allocation7 + $0x30] sm:$0xff]
        %v533 = vld [vmem:[#allocation7 + $0x38] sm:$0xff]
        %v534 = vld [vmem:[%s3] sm:$0x3]
        %v536 = vperm.slane %v534, 0
        %v537 = vperm.slane %v534, 1
        %vm540 = vcmask 261120
        %v542 = vsel %vm540, %v523, 0
        %544 = vmatpush.msra.mxu0 0.0
        %545 = vmatpush.msra.mxu0 0.0
        %546 = vmatpush.msra.mxu0 0.0
        %547 = vmatpush.msra.mxu0 0.0
        %548 = vmatpush.msra.mxu0 0.0
        %549 = vmatpush.msra.mxu0 0.0
        %550 = vmatpush.msra.mxu0 0.0
        %551 = vmatpush.msra.mxu0 0.0
        %552 = vmatpush.msra.mxu0 0.0
        %553 = vmatpush.msra.mxu0 0.0
        %554 = vmatpush.msra.mxu0 0.0
        %555 = vmatpush.msra.mxu0 0.0
        %556 = vmatpush.msra.mxu0 %v532
        %557 = vmatpush.msra.mxu0 %v530
        %558 = vmatpush.msra.mxu0 %v528
        %559 = vmatpush.msra.mxu0 %v526
        %560 = vmatmul.f32.gmra.mxu0 %v542
        %v561 = vpop.f32.mrf.mxu0
        %v562 = vadd.f32 %v536, %v561
        %563 = vdwg.mxu0
        %564 = vmatpush.msra.mxu0 0.0
        %565 = vmatpush.msra.mxu0 0.0
        %566 = vmatpush.msra.mxu0 0.0
        %567 = vmatpush.msra.mxu0 0.0
        %568 = vmatpush.msra.mxu0 0.0
        %569 = vmatpush.msra.mxu0 0.0
        %570 = vmatpush.msra.mxu0 0.0
        %571 = vmatpush.msra.mxu0 0.0
        %572 = vmatpush.msra.mxu0 0.0
        %573 = vmatpush.msra.mxu0 0.0
        %574 = vmatpush.msra.mxu0 0.0
        %575 = vmatpush.msra.mxu0 0.0
        %576 = vmatpush.msra.mxu0 %v533
        %577 = vmatpush.msra.mxu0 %v531
        %578 = vmatpush.msra.mxu0 %v529
        %579 = vmatpush.msra.mxu0 %v527
        %580 = vmatmul.f32.gmra.mxu0 %v542
        %v581 = vpop.f32.mrf.mxu0
        %v582 = vadd.f32 %v537, %v581
        %583 = vdwg.mxu0
        %v584 = vld [vmem:[#allocation8] sm:$0xff]
        %v585 = vld [vmem:[#allocation8 + $0x8] sm:$0xff]
        %v586 = vld [vmem:[#allocation8 + $0x10] sm:$0xff]
        %v587 = vld [vmem:[#allocation8 + $0x18] sm:$0xff]
        %v588 = vld [vmem:[#allocation8 + $0x20] sm:$0xff]
        %v589 = vld [vmem:[#allocation8 + $0x28] sm:$0xff]
        %v590 = vld [vmem:[#allocation8 + $0x30] sm:$0xff]
        %v591 = vld [vmem:[#allocation8 + $0x38] sm:$0xff]
        %v592 = vld [vmem:[#allocation8 + $0x40] sm:$0xff]
        %v593 = vld [vmem:[#allocation8 + $0x48] sm:$0xff]
        %v594 = vld [vmem:[#allocation8 + $0x50] sm:$0xff]
        %v595 = vld [vmem:[#allocation8 + $0x58] sm:$0xff]
        %v596 = vld [vmem:[#allocation8 + $0x60] sm:$0xff]
        %v597 = vld [vmem:[#allocation8 + $0x68] sm:$0xff]
        %v598 = vld [vmem:[#allocation8 + $0x70] sm:$0xff]
        %v599 = vld [vmem:[#allocation8 + $0x78] sm:$0xff]
        %v600 = vld [vmem:[%s5] sm:$0x3]
        %v602 = vperm.slane %v600, 0
        %v603 = vperm.slane %v600, 1
        %vm606 = vcmask 523264
        %v608 = vsel %vm606, %v524, 0
        %v611 = vsel %vm606, %v525, 0
        %613 = vmatpush.msra.mxu0 0.0
        %614 = vmatpush.msra.mxu0 0.0
        %615 = vmatpush.msra.mxu0 0.0
        %616 = vmatpush.msra.mxu0 0.0
        %617 = vmatpush.msra.mxu0 0.0
        %618 = vmatpush.msra.mxu0 0.0
        %619 = vmatpush.msra.mxu0 0.0
        %620 = vmatpush.msra.mxu0 0.0
        %621 = vmatpush.msra.mxu0 %v598
        %622 = vmatpush.msra.mxu0 %v596
        %623 = vmatpush.msra.mxu0 %v594
        %624 = vmatpush.msra.mxu0 %v592
        %625 = vmatpush.msra.mxu0 %v590
        %626 = vmatpush.msra.mxu0 %v588
        %627 = vmatpush.msra.mxu0 %v586
        %628 = vmatpush.msra.mxu0 %v584
        %629 = vmatmul.f32.gmra.mxu0 %v608
        %v630 = vpop.f32.mrf.mxu0
        %v631 = vadd.f32 %v602, %v630
        %632 = vmatmul.f32.gmra.mxu0 %v611
        %v633 = vpop.f32.mrf.mxu0
        %v634 = vadd.f32 %v602, %v633
        %635 = vdwg.mxu0
        %636 = vmatpush.msra.mxu0 0.0
        %637 = vmatpush.msra.mxu0 0.0
        %638 = vmatpush.msra.mxu0 0.0
        %639 = vmatpush.msra.mxu0 0.0
        %640 = vmatpush.msra.mxu0 0.0
        %641 = vmatpush.msra.mxu0 0.0
        %642 = vmatpush.msra.mxu0 0.0
        %643 = vmatpush.msra.mxu0 0.0
        %644 = vmatpush.msra.mxu0 %v599
        %645 = vmatpush.msra.mxu0 %v597
        %646 = vmatpush.msra.mxu0 %v595
        %647 = vmatpush.msra.mxu0 %v593
        %648 = vmatpush.msra.mxu0 %v591
        %649 = vmatpush.msra.mxu0 %v589
        %650 = vmatpush.msra.mxu0 %v587
        %651 = vmatpush.msra.mxu0 %v585
        %652 = vmatmul.f32.gmra.mxu0 %v608
        %v653 = vpop.f32.mrf.mxu0
        %v654 = vadd.f32 %v603, %v653
        %655 = vmatmul.f32.gmra.mxu0 %v611
        %v656 = vpop.f32.mrf.mxu0
        %v657 = vadd.f32 %v603, %v656
        %658 = vdwg.mxu0
        %v660 = vsel %vm606, %v562, 0
        %662 = vmatpush.xpose.msra.mxu0 0.0
        %663 = vmatpush.xpose.msra.mxu0 0.0
        %664 = vmatpush.xpose.msra.mxu0 0.0
        %665 = vmatpush.xpose.msra.mxu0 0.0
        %666 = vmatpush.xpose.msra.mxu0 0.0
        %667 = vmatpush.xpose.msra.mxu0 0.0
        %668 = vmatpush.xpose.msra.mxu0 0.0
        %669 = vmatpush.xpose.msra.mxu0 0.0
        %670 = vmatpush.xpose.msra.mxu0 0.0
        %671 = vmatpush.xpose.msra.mxu0 0.0
        %672 = vmatpush.xpose.msra.mxu0 0.0
        %673 = vmatpush.xpose.msra.mxu0 0.0
        %674 = vmatpush.xpose.msra.mxu0 0.0
        %675 = vmatpush.xpose.msra.mxu0 0.0
        %676 = vmatpush.xpose.msra.mxu0 %v611
        %677 = vmatpush.xpose.msra.mxu0 %v608
        %678 = vmatmul.f32.gmra.mxu0 %v660
        %v679 = vpop.f32.mrf.mxu0
        %v680 = vadd.f32 0.0, %v679
        %681 = vdwg.mxu0
        %v682 = vmul.f32 %v680, 0.125
        %v683 = vxor.u32 %v682, 2147483648
        %v684 = vmul.f32 %v683, 1.442695
        %v685 = vpow.pop %v684
        %v686 = vadd.f32 %v685, 1.0
        %v687 = vrcp.pop %v686
        %v688 = vmul.f32 %v686, %v687
        %v689 = vsub.f32 1.0, %v688
        %v690 = vmul.f32 %v687, %v689
        %v691 = vadd.f32 %v687, %v690
        %vm692 = vweird.f32 %v686
        %vm693 = vweird.f32 %v687
        %vm694 = vmor %vm692, %vm693
        %v695 = vsel %vm694, %v687, %v691
        %v696 = vand.u32 2147483647, %v686
        %vm697 = vcmp.eq.f32.partialorder %v696, 8.507059e+37
        %v698 = vand.u32 %v686, 2147483648
        %v699 = vor.u32 1.1754944e-38, %v698
        %v700 = vsel %vm697, %v699, %v695
        %v701 = vmul.f32 1.0, %v700
        %v702 = vmul.f32 %v680, 0.17677669
        %v703 = vxor.u32 %v702, 2147483648
        %v704 = vmul.f32 %v703, 1.442695
        %v705 = vpow.pop %v704
        %v706 = vadd.f32 %v705, 1.0
        %v707 = vrcp.pop %v706
        %v708 = vmul.f32 %v706, %v707
        %v709 = vsub.f32 1.0, %v708
        %v710 = vmul.f32 %v707, %v709
        %v711 = vadd.f32 %v707, %v710
        %vm712 = vweird.f32 %v706
        %vm713 = vweird.f32 %v707
        %vm714 = vmor %vm712, %vm713
        %v715 = vsel %vm714, %v707, %v711
        %v716 = vand.u32 2147483647, %v706
        %vm717 = vcmp.eq.f32.partialorder %v716, 8.507059e+37
        %v718 = vand.u32 %v706, 2147483648
        %v719 = vor.u32 1.1754944e-38, %v718
        %v720 = vsel %vm717, %v719, %v715
        %v721 = vmul.f32 1.0, %v720
        %vm722 = vcmask 130048
        %v724 = vsel %vm722, %v701, 0
        %726 = vmatpush.msra.mxu0 0.0
        %727 = vmatpush.msra.mxu0 0.0
        %728 = vmatpush.msra.mxu0 0.0
        %729 = vmatpush.msra.mxu0 0.0
        %730 = vmatpush.msra.mxu0 0.0
        %731 = vmatpush.msra.mxu0 0.0
        %732 = vmatpush.msra.mxu0 0.0
        %733 = vmatpush.msra.mxu0 0.0
        %734 = vmatpush.msra.mxu0 0.0
        %735 = vmatpush.msra.mxu0 0.0
        %736 = vmatpush.msra.mxu0 0.0
        %737 = vmatpush.msra.mxu0 0.0
        %738 = vmatpush.msra.mxu0 0.0
        %739 = vmatpush.msra.mxu0 0.0
        %740 = vmatpush.msra.mxu0 %v634
        %741 = vmatpush.msra.mxu0 %v631
        %742 = vmatmul.f32.gmra.mxu0 %v724
        %v743 = vpop.f32.mrf.mxu0
        %v744 = vadd.f32 0.0, %v743
        %745 = vdwg.mxu0
        %746 = vxpose.xlu0.b32.start [1/16] %v721, 128
        %747 = vxpose.xlu0.b32.cont [2/16] 0.0, 128
        %748 = vxpose.xlu0.b32.cont [3/16] 0.0, 128
        %749 = vxpose.xlu0.b32.cont [4/16] 0.0, 128
        %750 = vxpose.xlu0.b32.cont [5/16] 0.0, 128
        %751 = vxpose.xlu0.b32.cont [6/16] 0.0, 128
        %752 = vxpose.xlu0.b32.cont [7/16] 0.0, 128
        %753 = vxpose.xlu0.b32.cont [8/16] 0.0, 128
        %754 = vxpose.xlu0.b32.cont [9/16] 0.0, 128
        %755 = vxpose.xlu0.b32.cont [10/16] 0.0, 128
        %756 = vxpose.xlu0.b32.cont [11/16] 0.0, 128
        %757 = vxpose.xlu0.b32.cont [12/16] 0.0, 128
        %758 = vxpose.xlu0.b32.cont [13/16] 0.0, 128
        %759 = vxpose.xlu0.b32.cont [14/16] 0.0, 128
        %760 = vxpose.xlu0.b32.cont [15/16] 0.0, 128
        %761 = vxpose.xlu0.b32.end [16/16] 0.0, 128
        %v762 = vpop.trf.xlu0
        %v763 = vpop.trf.xlu0
        %v764 = vpop.trf.xlu0
        %v765 = vpop.trf.xlu0
        %v766 = vpop.trf.xlu0
        %v767 = vpop.trf.xlu0
        %v768 = vpop.trf.xlu0
        %v769 = vpop.trf.xlu0
        %v770 = vpop.trf.xlu0
        %v771 = vpop.trf.xlu0
        %v772 = vpop.trf.xlu0
        %v773 = vpop.trf.xlu0
        %v774 = vpop.trf.xlu0
        %v775 = vpop.trf.xlu0
        %v776 = vpop.trf.xlu0
        %v777 = vpop.trf.xlu0
        %778 = vrot.lane.b32.xlu0 %v562, 64
        %v779 = vpop.permute.xlu0 %778
        %vm781 = vcmask 64512
        %v783 = vsel %vm781, %v762, 0
        %v786 = vsel %vm781, %v763, 0
        %788 = vmatpush.msra.mxu0 0.0
        %789 = vmatpush.msra.mxu0 0.0
        %790 = vmatpush.msra.mxu0 0.0
        %791 = vmatpush.msra.mxu0 0.0
        %792 = vmatpush.msra.mxu0 0.0
        %793 = vmatpush.msra.mxu0 0.0
        %794 = vmatpush.msra.mxu0 0.0
        %795 = vmatpush.msra.mxu0 0.0
        %796 = vmatpush.msra.mxu0 0.0
        %797 = vmatpush.msra.mxu0 0.0
        %798 = vmatpush.msra.mxu0 0.0
        %799 = vmatpush.msra.mxu0 0.0
        %800 = vmatpush.msra.mxu0 0.0
        %801 = vmatpush.msra.mxu0 0.0
        %802 = vmatpush.msra.mxu0 0.0
        %803 = vmatpush.msra.mxu0 %v779
        %804 = vmatmul.f32.gmra.mxu0 %v783
        %v805 = vpop.f32.mrf.mxu0
        %v806 = vadd.f32 0.0, %v805
        %807 = vmatmul.f32.gmra.mxu0 %v786
        %v808 = vpop.f32.mrf.mxu0
        %v809 = vadd.f32 0.0, %v808
        %810 = vdwg.mxu0
        %v811 = vld [vmem:[#allocation10] sm:$0xff]
        %v812 = vld [vmem:[#allocation10 + $0x8] sm:$0xff]
        %v813 = vld [vmem:[#allocation10 + $0x10] sm:$0xff]
        %v814 = vld [vmem:[#allocation10 + $0x18] sm:$0xff]
        %v815 = vld [vmem:[%s7] sm:$0x1]
        %v817 = vperm.slane %v815, 0
        %v820 = vsel %vm540, %v744, 0
        %822 = vmatpush.msra.mxu0 0.0
        %823 = vmatpush.msra.mxu0 0.0
        %824 = vmatpush.msra.mxu0 0.0
        %825 = vmatpush.msra.mxu0 0.0
        %826 = vmatpush.msra.mxu0 0.0
        %827 = vmatpush.msra.mxu0 0.0
        %828 = vmatpush.msra.mxu0 0.0
        %829 = vmatpush.msra.mxu0 0.0
        %830 = vmatpush.msra.mxu0 0.0
        %831 = vmatpush.msra.mxu0 0.0
        %832 = vmatpush.msra.mxu0 0.0
        %833 = vmatpush.msra.mxu0 0.0
        %834 = vmatpush.msra.mxu0 %v814
        %835 = vmatpush.msra.mxu0 %v813
        %836 = vmatpush.msra.mxu0 %v812
        %837 = vmatpush.msra.mxu0 %v811
        %838 = vmatmul.f32.gmra.mxu0 %v820
        %v839 = vpop.f32.mrf.mxu0
        %v840 = vadd.f32 %v817, %v839
        %841 = vdwg.mxu0
        %v842 = vadd.f32 %v582, %v840
        %v843 = vxor.u32 %v842, 2147483648
        %v844 = vmul.f32 %v843, 1.442695
        %v845 = vpow.pop %v844
        %v846 = vadd.f32 %v845, 1.0
        %v847 = vrcp.pop %v846
        %v848 = vmul.f32 %v846, %v847
        %v849 = vsub.f32 1.0, %v848
        %v850 = vmul.f32 %v847, %v849
        %v851 = vadd.f32 %v847, %v850
        %vm852 = vweird.f32 %v846
        %vm853 = vweird.f32 %v847
        %vm854 = vmor %vm852, %vm853
        %v855 = vsel %vm854, %v847, %v851
        %v856 = vand.u32 2147483647, %v846
        %vm857 = vcmp.eq.f32.partialorder %v856, 8.507059e+37
        %v858 = vand.u32 %v846, 2147483648
        %v859 = vor.u32 1.1754944e-38, %v858
        %v860 = vsel %vm857, %v859, %v855
        %v861 = vmul.f32 1.0, %v860
        %v862 = vtanh.pop %v582
        %864 = vrot.lane.b32.xlu0 %v862, 96
        %v865 = vpop.permute.xlu0 %864
        %v867 = vmul.f32 %v861, %v865
        %v868 = vsub.f32 1.0, %v861
        %v869 = vtanh.pop %v840
        %871 = vrot.lane.b32.xlu0 %v869, 96
        %v872 = vpop.permute.xlu0 %871
        %v874 = vmul.f32 %v868, %v872
        %v875 = vadd.f32 %v867, %v874
        %v876 = vld [vmem:[#allocation11] sm:$0xff]
        %v877 = vld [vmem:[#allocation11 + $0x8] sm:$0xff]
        %v878 = vld [vmem:[#allocation11 + $0x10] sm:$0xff]
        %v879 = vld [vmem:[#allocation11 + $0x18] sm:$0xff]
        %v880 = vld [vmem:[#allocation11 + $0x20] sm:$0xff]
        %v881 = vld [vmem:[#allocation11 + $0x28] sm:$0xff]
        %v882 = vld [vmem:[#allocation11 + $0x30] sm:$0xff]
        %v883 = vld [vmem:[#allocation11 + $0x38] sm:$0xff]
        %v884 = vld [vmem:[%s9] sm:$0x1]
        %v886 = vperm.slane %v884, 0
        %v889 = vsel %vm606, %v806, 0
        %v892 = vsel %vm606, %v809, 0
        %894 = vmatpush.msra.mxu0 0.0
        %895 = vmatpush.msra.mxu0 0.0
        %896 = vmatpush.msra.mxu0 0.0
        %897 = vmatpush.msra.mxu0 0.0
        %898 = vmatpush.msra.mxu0 0.0
        %899 = vmatpush.msra.mxu0 0.0
        %900 = vmatpush.msra.mxu0 0.0
        %901 = vmatpush.msra.mxu0 0.0
        %902 = vmatpush.msra.mxu0 %v883
        %903 = vmatpush.msra.mxu0 %v882
        %904 = vmatpush.msra.mxu0 %v881
        %905 = vmatpush.msra.mxu0 %v880
        %906 = vmatpush.msra.mxu0 %v879
        %907 = vmatpush.msra.mxu0 %v878
        %908 = vmatpush.msra.mxu0 %v877
        %909 = vmatpush.msra.mxu0 %v876
        %910 = vmatmul.f32.gmra.mxu0 %v889
        %v911 = vpop.f32.mrf.mxu0
        %v912 = vadd.f32 %v886, %v911
        %913 = vmatmul.f32.gmra.mxu0 %v892
        %v914 = vpop.f32.mrf.mxu0
        %v915 = vadd.f32 %v886, %v914
        %916 = vdwg.mxu0
        %919 = vrot.lane.b32.xlu0 %v912, 32
        %v920 = vpop.permute.xlu0 %919
        %921 = vrot.lane.b32.xlu0 %v915, 32
        %v922 = vpop.permute.xlu0 %921
        %v925 = vadd.f32 %v631, %v920
        %v926 = vadd.f32 %v634, %v922
        %v927 = vxor.u32 %v925, 2147483648
        %v928 = vxor.u32 %v926, 2147483648
        %v929 = vmul.f32 %v927, 1.442695
        %v930 = vpow.pop %v929
        %v931 = vmul.f32 %v928, 1.442695
        %v932 = vpow.pop %v931
        %v933 = vadd.f32 %v930, 1.0
        %v934 = vadd.f32 %v932, 1.0
        %v935 = vrcp.pop %v933
        %v936 = vmul.f32 %v933, %v935
        %v937 = vsub.f32 1.0, %v936
        %v938 = vmul.f32 %v935, %v937
        %v939 = vadd.f32 %v935, %v938
        %vm940 = vweird.f32 %v933
        %vm941 = vweird.f32 %v935
        %vm942 = vmor %vm940, %vm941
        %v943 = vsel %vm942, %v935, %v939
        %v944 = vand.u32 2147483647, %v933
        %vm945 = vcmp.eq.f32.partialorder %v944, 8.507059e+37
        %v946 = vand.u32 %v933, 2147483648
        %v947 = vor.u32 1.1754944e-38, %v946
        %v948 = vsel %vm945, %v947, %v943
        %v949 = vmul.f32 1.0, %v948
        %v950 = vrcp.pop %v934
        %v951 = vmul.f32 %v934, %v950
        %v952 = vsub.f32 1.0, %v951
        %v953 = vmul.f32 %v950, %v952
        %v954 = vadd.f32 %v950, %v953
        %vm955 = vweird.f32 %v934
        %vm956 = vweird.f32 %v950
        %vm957 = vmor %vm955, %vm956
        %v958 = vsel %vm957, %v950, %v954
        %v959 = vand.u32 2147483647, %v934
        %vm960 = vcmp.eq.f32.partialorder %v959, 8.507059e+37
        %v961 = vand.u32 %v934, 2147483648
        %v962 = vor.u32 1.1754944e-38, %v961
        %v963 = vsel %vm960, %v962, %v958
        %v964 = vmul.f32 1.0, %v963
        %v965 = vtanh.pop %v631
        %v966 = vtanh.pop %v654
        %v967 = vtanh.pop %v634
        %v968 = vtanh.pop %v657
        %973 = vrot.lane.b32.xlu0 %v965, 64
        %v974 = vpop.permute.xlu0 %973
        %975 = vrot.lane.b32.xlu0 %v966, 64
        %v976 = vpop.permute.xlu0 %975
        %977 = vrot.lane.b32.xlu0 %v967, 64
        %v978 = vpop.permute.xlu0 %977
        %979 = vrot.lane.b32.xlu0 %v968, 64
        %v980 = vpop.permute.xlu0 %979
        %v981 = vsel %vm606, %v974, %v976
        %v982 = vsel %vm606, %v978, %v980
        %v985 = vmul.f32 %v949, %v981
        %v986 = vmul.f32 %v964, %v982
        %v987 = vsub.f32 1.0, %v949
        %v988 = vsub.f32 1.0, %v964
        %v989 = vtanh.pop %v912
        %v990 = vtanh.pop %v915
        %993 = vrot.lane.b32.xlu0 %v989, 96
        %v994 = vpop.permute.xlu0 %993
        %995 = vrot.lane.b32.xlu0 %v990, 96
        %v996 = vpop.permute.xlu0 %995
        %v999 = vmul.f32 %v987, %v994
        %v1000 = vmul.f32 %v988, %v996
        %v1001 = vadd.f32 %v985, %v999
        %v1002 = vadd.f32 %v986, %v1000
        %1003 = vst.msk [vmem:[%s515] sm:$0xff] %vm540, %v875
        %1006 = vrot.lane.b32.xlu0 %v1001, 96
        %v1007 = vpop.permute.xlu0 %1006
        %1008 = vrot.lane.b32.xlu0 %v1002, 96
        %v1009 = vpop.permute.xlu0 %1008
        %1012 = vst.msk [vmem:[%s522] sm:$0xff] %vm606, %v1007
        %1013 = vst.msk [vmem:[%s522 + $0x8] sm:$0xff] %vm606, %v1009
        %s1014 = sand.u32 %s265, 1
        %s1015 = scalar_lea.sflag [#allocation4], %s1014
        %s1016 = sand.u32 %s265, 1
        %s1017 = smul.addr %s1016, 8
        %s1018 = scalar_lea.vmem [#allocation13], %s1017
        %s1019 = sand.u32 %s291, 1
        %s1020 = scalar_lea.sflag [#allocation15], %s1019
        %s1021 = sand.u32 %s291, 1
        %s1022 = smul.addr %s1021, 16
        %s1023 = scalar_lea.vmem [#allocation14], %s1022
        // Predicated region
        $region85: #{tpu_custom_call.1} parent=59 // pred_check
          %p1024 = pneg %p275
        $region86: #{tpu_custom_call.1} parent=59 // pred_check_branch
          %1026 = sbr.rel (%p1024) target = $region88
        $region87: #{tpu_custom_call.1} parent=59 // pred_region
          %1028 = vsyncadd %s1015, 0
          %s1029 = smul.addr %s37, 8
          %s1030 = scalar_lea.hbm %s10, %s1029
          %s1032 = sshll.u32 %s1018, 4
          %s1033 = int_to_ptr.vmem [resolvable:$true] %s1032
          %s1034 = sshll.u32 %s1030, 4
          %s1035 = int_to_ptr.hbm [resolvable:$true] %s1034
          %1037 = dma.vmem_to_hbm [thread:$0]  %s1033, 128, %s1035, %s1015
        $region88: #{tpu_custom_call.1} parent=59 // pred_fallthru
          _
        // Predicated region
        $region89: #{tpu_custom_call.1} parent=59 // pred_check
          %p1038 = pneg %p301
        $region90: #{tpu_custom_call.1} parent=59 // pred_check_branch
          %1040 = sbr.rel (%p1038) target = $region92
        $region91: #{tpu_custom_call.1} parent=59 // pred_region
          %1042 = vsyncadd %s1020, 0
          %s1043 = smul.addr %s37, 2
          %s1044 = smul.addr %s1043, 8
          %s1045 = scalar_lea.hbm %s11, %s1044
          %s1046 = sshll.u32 %s1023, 4
          %s1047 = int_to_ptr.vmem [resolvable:$true] %s1046
          %s1048 = sshll.u32 %s1045, 4
          %s1049 = int_to_ptr.hbm [resolvable:$true] %s1048
          %1054 = dma.vmem_to_hbm [thread:$0]  %s1047, 256, %s1049, %s1020, 128, 128, 8
        $region92: #{tpu_custom_call.1} parent=59 // pred_fallthru
          _
      $region60: #{tpu_custom_call.1} parent=5 // pred_fallthru
        _
      %p1055 = scmp.le.s32.totalorder 2, %s32
      // Predicated region
      $region93: #{tpu_custom_call.1} parent=5 // pred_check
        %p1056 = pneg %p1055
      $region94: #{tpu_custom_call.1} parent=5 // pred_check_branch
        %1058 = sbr.rel (%p1056) target = $region96
      $region95: #{tpu_custom_call.1} parent=5 // pred_region
        %s1059 = ssub.s32 %s32, 2
        // Predicated region
        $region97: #{tpu_custom_call.1} parent=95 // pred_check
          %p1060 = pneg %p281
        $region98: #{tpu_custom_call.1} parent=95 // pred_check_branch
          %1062 = sbr.rel (%p1060) target = $region100
        $region99: #{tpu_custom_call.1} parent=95 // pred_region
          %s1063 = sand.u32 %s266, 1
          %s1064 = scalar_lea.sflag [#allocation4], %s1063
          %s1065 = sand.u32 %s266, 1
          %s1066 = smul.addr %s1065, 8
          %s1067 = scalar_lea.vmem [#allocation13], %s1066
          %1069 = dma.done %s1064, 128
        $region100: #{tpu_custom_call.1} parent=95 // pred_fallthru
          _
        // Predicated region
        $region101: #{tpu_custom_call.1} parent=95 // pred_check
          %p1070 = pneg %p307
        $region102: #{tpu_custom_call.1} parent=95 // pred_check_branch
          %1072 = sbr.rel (%p1070) target = $region104
        $region103: #{tpu_custom_call.1} parent=95 // pred_region
          %s1073 = sand.u32 %s292, 1
          %s1074 = scalar_lea.sflag [#allocation15], %s1073
          %s1075 = sand.u32 %s292, 1
          %s1076 = smul.addr %s1075, 16
          %s1077 = scalar_lea.vmem [#allocation14], %s1076
          %1079 = dma.done %s1074, 256
        $region104: #{tpu_custom_call.1} parent=95 // pred_fallthru
          _
      $region96: #{tpu_custom_call.1} parent=5 // pred_fallthru
        _
    $region6: #{tpu_custom_call.1} parent=1 // loop_footer
      %s36 = sadd.s32 1, %s32
    $region7: #{tpu_custom_call.1} parent=1 // loop_footer_branch
      %31 = sbr.rel target = $region3
    $region8: #{tpu_custom_call.1} parent=1 // loop_exit
      _
    %1080 = vsyncpa [#allocation3], 1
    %s1081 = scalar_lea.sflag [#allocation3], 1
    %1082 = vsyncpa %s1081, 1
    %1083 = vsyncpa [#allocation6], 1
    %s1084 = scalar_lea.sflag [#allocation6], 1
    %1085 = vsyncpa %s1084, 1
    %1086 = vsyncpa [#allocation9], 1
    %1087 = vsyncpa [#allocation12], 1
    %1088 = vsyncpa [#allocation4], 1
    %s1089 = scalar_lea.sflag [#allocation4], 1
    %1090 = vsyncpa %s1089, 1
    %1091 = vsyncpa [#allocation15], 1
    %s1092 = scalar_lea.sflag [#allocation15], 1
    %1093 = vsyncpa %s1092, 1

</llo_original>
